<compile_context>
chip_gen: v6e
topology: v6e:2x2x1
jax: 0.10.0
libtpu: 0.0.40
codegen_flags: <defaults>
</compile_context>

<pallas_src>
import functools

import numpy as np

import jax
import jax.numpy as jnp
from jax.experimental import pallas as pl
from jax.experimental.pallas import tpu as pltpu


def _round_up(x, m):
    return (x + m - 1) // m * m


def _pick_row_tile(H, Wp):
    """Row-tile height TH and tile count T.

    TH is a multiple of 16 so that (with Wp % 8 == 0) the per-tile flattened
    output span TH * Wp is a multiple of 128 lanes, keeping the Blocked tiling
    of the flat output axis legal and the stores unmasked.  Small frames use a
    single whole-frame tile (block == full array, always legal).
    """
    if H <= 16 or H * Wp <= 4096:
        return H, 1
    th = (min(H, max(16, 4096 // Wp)) // 16) * 16
    th = max(th, 16)
    return th, -(-H // th)


def _conv_refpad_kernel(x_ref, w_ref, o_ref, xcat_ref, *, C, K, Wp, Sout):
    """One (batch, row-tile, out-channel-tile) grid step.

    x_ref    : (1, 1, C, Sin)     halo'd padded rows, flattened (row stride Wp)
    w_ref    : (TO, K*K*C)        weights, tap-major / channel-minor
    o_ref    : (1, TO, Sout)      flattened output rows (lane-dense)
    xcat_ref : (K*K*C, Sout) VMEM im2col scratch (contraction operand)
    """
    # VMEM-local im2col: rows [tap*C, (tap+1)*C) hold the frame shifted by
    # tap = (ki, kj).  All slice offsets are static Python ints.
    for ki in range(K):
        for kj in range(K):
            tap = ki * K + kj
            off = ki * Wp + kj
            xcat_ref[tap * C:(tap + 1) * C, :] = x_ref[0, 0, :, off:off + Sout]
    # Single MXU matmul with contraction C*K*K, f32 accumulation, stored
    # directly to the output block (no traced accumulator, no copy epilogue).
    o_ref[0] = jnp.dot(w_ref[...], xcat_ref[...],
                       preferred_element_type=jnp.float32).astype(o_ref.dtype)


class Conv2dRefPad:
    """Pallas TPU equivalent of the PyTorch `Conv2d_refpad` module."""

    def __init__(self, weight, *, compute_dtype=jnp.bfloat16,
                 out_dtype=jnp.float32):
        weight = jnp.asarray(weight, jnp.float32)       # (O, C, K, K) as nn.Conv2d
        self.out_c, self.in_c, self.k, k2 = weight.shape
        assert self.k == k2 and self.k % 2 == 1, "odd square kernels only"
        self.pad = self.k // 2
        self.compute_dtype = compute_dtype              # MXU feed dtype (bf16 default)
        self.out_dtype = out_dtype                      # kernel writeback dtype
        # Hoisted weight relayout + cast (once, not per forward call):
        # (O, C, K, K) -> (O, K, K, C) -> (O, K*K*C); column (ki*K + kj)*C + c
        # matches the in-kernel im2col row order.
        self.w2 = jnp.transpose(weight, (0, 2, 3, 1)).reshape(
            self.out_c, self.k * self.k * self.in_c).astype(compute_dtype)

    def __call__(self, x):
        B, C, H, W = x.shape
        assert C == self.in_c, (C, self.in_c)
        K, p, O = self.k, self.pad, self.out_c
        Hp = H + 2 * p
        Wp = _round_up(W + 2 * p, 8)           # padded row stride (multiple of 8)
        TH, T = _pick_row_tile(H, Wp)
        Sin = (TH + K) * Wp                    # halo'd rows (+1 spare row so each
                                               #   tap slice is a full Sout window)
        Sout = TH * Wp

        # Reflection pad (rows & cols) + width alignment, staying NCHW.  The
        # halo'd row tiles (clamped gather; the clamp only feeds wrap-around
        # garbage positions) are the one activation copy that hits HBM.
        xp = jnp.pad(x, ((0, 0), (0, 0), (p, p), (p, p)), mode="reflect")
        xp = jnp.pad(xp, ((0, 0), (0, 0), (0, 0), (0, Wp - (W + 2 * p))))
        rows = np.minimum(
            np.arange(T)[:, None] * TH + np.arange(TH + K)[None, :], Hp - 1)
        xt = jnp.take(xp, rows, axis=2)                  # (B, C, T, TH+K, Wp)
        xt = jnp.transpose(xt, (0, 2, 1, 3, 4))          # (B, T, C, TH+K, Wp)
        xt = xt.reshape(B, T, C, Sin).astype(self.compute_dtype)

        # Output-channel tiling: whole O unless it is genuinely large.
        TO = 128 if (O > 256 and O % 128 == 0) else O
        grid = (B, T, O // TO)

        kernel = functools.partial(_conv_refpad_kernel,
                                   C=C, K=K, Wp=Wp, Sout=Sout)
        out = pl.pallas_call(
            kernel,
            out_shape=jax.ShapeDtypeStruct((B, O, T * Sout), self.out_dtype),
            grid_spec=pltpu.PrefetchScalarGridSpec(
                num_scalar_prefetch=0,
                grid=grid,
                in_specs=[
                    # Halo'd activation row tile.  If a profile ever shows the
                    # input DMA exposed, raise depth via
                    # pipeline_mode=pl.Buffered(3) on this spec.
                    pl.BlockSpec((1, 1, C, Sin), lambda b, t, j: (b, t, 0, 0)),
                    pl.BlockSpec((TO, K * K * C), lambda b, t, j: (j, 0)),
                ],
                out_specs=pl.BlockSpec((1, TO, Sout),
                                       lambda b, t, j: (b, j, t)),
                scratch_shapes=[
                    pltpu.VMEM((K * K * C, Sout), self.compute_dtype)],
            ),
            compiler_params=pltpu.CompilerParams(
                dimension_semantics=("parallel", "parallel", "parallel"),
                vmem_limit_bytes=32 * 1024 * 1024),
        )(xt, self.w2)

        # Wrap-around columns (w >= W inside each Wp-strided row) and ragged
        # tail rows (>= H) hold computed garbage; slice them away here — they
        # must never be read anywhere else.
        out = out.reshape(B, O, T * TH, Wp)[:, :, :H, :W]
        return out


def _reference(x, weight):
    """Pure-XLA reference: ReflectionPad2d(k//2) + VALID conv (NCHW / OIHW)."""
    p = weight.shape[-1] // 2
    xp = jnp.pad(x, ((0, 0), (0, 0), (p, p), (p, p)), mode="reflect")
    return jax.lax.conv_general_dilated(
        xp, weight, window_strides=(1, 1), padding="VALID",
        dimension_numbers=("NCHW", "OIHW", "NCHW"),
        precision=jax.lax.Precision.HIGHEST)


if __name__ == "__main__":
    key = jax.random.PRNGKey(0)
    kx, kw, kx2, kw2 = jax.random.split(key, 4)

    # --- primary small shape ------------------------------------------------
    B, C, H, W, O, K = 2, 4, 16, 16, 16, 3
    x = jax.random.normal(kx, (B, C, H, W), jnp.float32)
    weight = jax.random.normal(kw, (O, C, K, K), jnp.float32) / float(C * K * K) ** 0.5

    mod = Conv2dRefPad(weight)                     # default: bf16 MXU feed, f32 out
    out = jax.block_until_ready(jax.jit(mod.__call__)(x))
    assert out.shape == (B, O, H, W), out.shape
    assert bool(jnp.all(jnp.isfinite(out)))
    ref_b = _reference(x.astype(jnp.bfloat16).astype(jnp.float32),
                       weight.astype(jnp.bfloat16).astype(jnp.float32))
    err = float(jnp.max(jnp.abs(out - ref_b)))
    assert err < 1e-2, f"bf16-path max abs err {err}"

    # --- float32 parity knob (strict comparison against the f32 reference) --
    mod32 = Conv2dRefPad(weight, compute_dtype=jnp.float32)
    out32 = jax.block_until_ready(jax.jit(mod32.__call__)(x))
    err32 = float(jnp.max(jnp.abs(out32 - _reference(x, weight))))
    assert err32 < 2e-2, f"f32-path max abs err {err32}"

    # --- larger frame exercising the row-tiled path (T > 1, ragged tile) ----
    B2, C2, H2, W2, O2 = 1, 3, 64, 64, 8
    x2 = jax.random.normal(kx2, (B2, C2, H2, W2), jnp.float32)
    weight2 = jax.random.normal(kw2, (O2, C2, K, K), jnp.float32) / float(C2 * K * K) ** 0.5
    mod2 = Conv2dRefPad(weight2)
    out2 = jax.block_until_ready(jax.jit(mod2.__call__)(x2))
    assert out2.shape == (B2, O2, H2, W2), out2.shape
    ref2 = _reference(x2.astype(jnp.bfloat16).astype(jnp.float32),
                      weight2.astype(jnp.bfloat16).astype(jnp.float32))
    err2 = float(jnp.max(jnp.abs(out2 - ref2)))
    assert err2 < 1e-2, f"row-tiled bf16-path max abs err {err2}"

    print("KERNEL_OK")
</pallas_src>

<mosaic_0001>
module attributes {stable_mosaic.version = 11 : i64} {
  func.func @_conv_refpad_kernel(%arg0: i32, %arg1: i32, %arg2: i32, %arg3: memref<1x1x4x456xbf16, #tpu.memory_space<vmem>>, %arg4: memref<16x36xbf16, #tpu.memory_space<vmem>>, %arg5: memref<1x16x384xf32, #tpu.memory_space<vmem>>, %arg6: memref<36x384xbf16, #tpu.memory_space<vmem>>) attributes {dimension_semantics = [#tpu.dimension_semantics<parallel>, #tpu.dimension_semantics<parallel>, #tpu.dimension_semantics<parallel>], iteration_bounds = array<i64: 2, 1, 1>, scalar_prefetch = 0 : i64, scratch_operands = 1 : i64, tpu.core_type = #tpu.core_type<tc>, window_params = [{transform_indices = @transform_0, window_bounds = array<i64: 1, 1, 4, 456>}, {transform_indices = @transform_1, window_bounds = array<i64: 16, 36>}, {transform_indices = @transform_2, window_bounds = array<i64: 1, 16, 384>}]} {
    %c0 = arith.constant 0 : index
    %c0_0 = arith.constant 0 : index
    %c0_1 = arith.constant 0 : index
    %c0_2 = arith.constant 0 : index
    %0 = vector.load %arg3[%c0, %c0_0, %c0_1, %c0_2] : memref<1x1x4x456xbf16, #tpu.memory_space<vmem>>, vector<1x1x4x384xbf16>
    %1 = vector.shape_cast %0 : vector<1x1x4x384xbf16> to vector<4x384xbf16>
    %c0_3 = arith.constant 0 : index
    %c0_4 = arith.constant 0 : index
    %2 = vector.load %arg6[%c0_3, %c0_4] : memref<36x384xbf16, #tpu.memory_space<vmem>>, vector<4x384xbf16>
    tpu.vector_store %arg6[%c0_3, %c0_4], %1 {strides = array<i32>} : memref<36x384xbf16, #tpu.memory_space<vmem>>, vector<4x384xbf16>,
    %c0_5 = arith.constant 0 : index
    %c0_6 = arith.constant 0 : index
    %c0_7 = arith.constant 0 : index
    %c1 = arith.constant 1 : index
    %3 = vector.load %arg3[%c0_5, %c0_6, %c0_7, %c1] : memref<1x1x4x456xbf16, #tpu.memory_space<vmem>>, vector<1x1x4x384xbf16>
    %4 = vector.shape_cast %3 : vector<1x1x4x384xbf16> to vector<4x384xbf16>
    %c4 = arith.constant 4 : index
    %c0_8 = arith.constant 0 : index
    %5 = vector.load %arg6[%c4, %c0_8] : memref<36x384xbf16, #tpu.memory_space<vmem>>, vector<4x384xbf16>
    tpu.vector_store %arg6[%c4, %c0_8], %4 {strides = array<i32>} : memref<36x384xbf16, #tpu.memory_space<vmem>>, vector<4x384xbf16>,
    %c0_9 = arith.constant 0 : index
    %c0_10 = arith.constant 0 : index
    %c0_11 = arith.constant 0 : index
    %c2 = arith.constant 2 : index
    %6 = vector.load %arg3[%c0_9, %c0_10, %c0_11, %c2] : memref<1x1x4x456xbf16, #tpu.memory_space<vmem>>, vector<1x1x4x384xbf16>
    %7 = vector.shape_cast %6 : vector<1x1x4x384xbf16> to vector<4x384xbf16>
    %c8 = arith.constant 8 : index
    %c0_12 = arith.constant 0 : index
    %8 = vector.load %arg6[%c8, %c0_12] : memref<36x384xbf16, #tpu.memory_space<vmem>>, vector<4x384xbf16>
    tpu.vector_store %arg6[%c8, %c0_12], %7 {strides = array<i32>} : memref<36x384xbf16, #tpu.memory_space<vmem>>, vector<4x384xbf16>,
    %c0_13 = arith.constant 0 : index
    %c0_14 = arith.constant 0 : index
    %c0_15 = arith.constant 0 : index
    %c24 = arith.constant 24 : index
    %9 = vector.load %arg3[%c0_13, %c0_14, %c0_15, %c24] : memref<1x1x4x456xbf16, #tpu.memory_space<vmem>>, vector<1x1x4x384xbf16>
    %10 = vector.shape_cast %9 : vector<1x1x4x384xbf16> to vector<4x384xbf16>
    %c12 = arith.constant 12 : index
    %c0_16 = arith.constant 0 : index
    %11 = vector.load %arg6[%c12, %c0_16] : memref<36x384xbf16, #tpu.memory_space<vmem>>, vector<4x384xbf16>
    tpu.vector_store %arg6[%c12, %c0_16], %10 {strides = array<i32>} : memref<36x384xbf16, #tpu.memory_space<vmem>>, vector<4x384xbf16>,
    %c0_17 = arith.constant 0 : index
    %c0_18 = arith.constant 0 : index
    %c0_19 = arith.constant 0 : index
    %c25 = arith.constant 25 : index
    %12 = vector.load %arg3[%c0_17, %c0_18, %c0_19, %c25] : memref<1x1x4x456xbf16, #tpu.memory_space<vmem>>, vector<1x1x4x384xbf16>
    %13 = vector.shape_cast %12 : vector<1x1x4x384xbf16> to vector<4x384xbf16>
    %c16 = arith.constant 16 : index
    %c0_20 = arith.constant 0 : index
    %14 = vector.load %arg6[%c16, %c0_20] : memref<36x384xbf16, #tpu.memory_space<vmem>>, vector<4x384xbf16>
    tpu.vector_store %arg6[%c16, %c0_20], %13 {strides = array<i32>} : memref<36x384xbf16, #tpu.memory_space<vmem>>, vector<4x384xbf16>,
    %c0_21 = arith.constant 0 : index
    %c0_22 = arith.constant 0 : index
    %c0_23 = arith.constant 0 : index
    %c26 = arith.constant 26 : index
    %15 = vector.load %arg3[%c0_21, %c0_22, %c0_23, %c26] : memref<1x1x4x456xbf16, #tpu.memory_space<vmem>>, vector<1x1x4x384xbf16>
    %16 = vector.shape_cast %15 : vector<1x1x4x384xbf16> to vector<4x384xbf16>
    %c20 = arith.constant 20 : index
    %c0_24 = arith.constant 0 : index
    %17 = vector.load %arg6[%c20, %c0_24] : memref<36x384xbf16, #tpu.memory_space<vmem>>, vector<4x384xbf16>
    tpu.vector_store %arg6[%c20, %c0_24], %16 {strides = array<i32>} : memref<36x384xbf16, #tpu.memory_space<vmem>>, vector<4x384xbf16>,
    %c0_25 = arith.constant 0 : index
    %c0_26 = arith.constant 0 : index
    %c0_27 = arith.constant 0 : index
    %c48 = arith.constant 48 : index
    %18 = vector.load %arg3[%c0_25, %c0_26, %c0_27, %c48] : memref<1x1x4x456xbf16, #tpu.memory_space<vmem>>, vector<1x1x4x384xbf16>
    %19 = vector.shape_cast %18 : vector<1x1x4x384xbf16> to vector<4x384xbf16>
    %c24_28 = arith.constant 24 : index
    %c0_29 = arith.constant 0 : index
    %20 = vector.load %arg6[%c24_28, %c0_29] : memref<36x384xbf16, #tpu.memory_space<vmem>>, vector<4x384xbf16>
    tpu.vector_store %arg6[%c24_28, %c0_29], %19 {strides = array<i32>} : memref<36x384xbf16, #tpu.memory_space<vmem>>, vector<4x384xbf16>,
    %c0_30 = arith.constant 0 : index
    %c0_31 = arith.constant 0 : index
    %c0_32 = arith.constant 0 : index
    %c49 = arith.constant 49 : index
    %21 = vector.load %arg3[%c0_30, %c0_31, %c0_32, %c49] : memref<1x1x4x456xbf16, #tpu.memory_space<vmem>>, vector<1x1x4x384xbf16>
    %22 = vector.shape_cast %21 : vector<1x1x4x384xbf16> to vector<4x384xbf16>
    %c28 = arith.constant 28 : index
    %c0_33 = arith.constant 0 : index
    %23 = vector.load %arg6[%c28, %c0_33] : memref<36x384xbf16, #tpu.memory_space<vmem>>, vector<4x384xbf16>
    tpu.vector_store %arg6[%c28, %c0_33], %22 {strides = array<i32>} : memref<36x384xbf16, #tpu.memory_space<vmem>>, vector<4x384xbf16>,
    %c0_34 = arith.constant 0 : index
    %c0_35 = arith.constant 0 : index
    %c0_36 = arith.constant 0 : index
    %c50 = arith.constant 50 : index
    %24 = vector.load %arg3[%c0_34, %c0_35, %c0_36, %c50] : memref<1x1x4x456xbf16, #tpu.memory_space<vmem>>, vector<1x1x4x384xbf16>
    %25 = vector.shape_cast %24 : vector<1x1x4x384xbf16> to vector<4x384xbf16>
    %c32 = arith.constant 32 : index
    %c0_37 = arith.constant 0 : index
    %26 = vector.load %arg6[%c32, %c0_37] : memref<36x384xbf16, #tpu.memory_space<vmem>>, vector<4x384xbf16>
    tpu.vector_store %arg6[%c32, %c0_37], %25 {strides = array<i32>} : memref<36x384xbf16, #tpu.memory_space<vmem>>, vector<4x384xbf16>,
    %c0_38 = arith.constant 0 : index
    %c0_39 = arith.constant 0 : index
    %27 = vector.load %arg4[%c0_38, %c0_39] : memref<16x36xbf16, #tpu.memory_space<vmem>>, vector<16x36xbf16>
    %c0_40 = arith.constant 0 : index
    %c0_41 = arith.constant 0 : index
    %28 = vector.load %arg6[%c0_40, %c0_41] : memref<36x384xbf16, #tpu.memory_space<vmem>>, vector<36x384xbf16>
    %cst = arith.constant dense<0.000000e+00> : vector<16x384xf32>
    %29 = tpu.matmul %27, %28, %cst {dimension_numbers = #tpu.dot_dimension_numbers<[1], [0], [0], [1], [0, 0, 1, 1], [], []>} : vector<16x36xbf16>, vector<36x384xbf16>, vector<16x384xf32> -> vector<16x384xf32>
    %c0_42 = arith.constant 0 : index
    %c0_43 = arith.constant 0 : index
    %c0_44 = arith.constant 0 : index
    %30 = vector.load %arg5[%c0_42, %c0_43, %c0_44] : memref<1x16x384xf32, #tpu.memory_space<vmem>>, vector<1x16x384xf32>
    %31 = vector.shape_cast %30 : vector<1x16x384xf32> to vector<16x384xf32>
    %32 = vector.shape_cast %29 : vector<16x384xf32> to vector<1x16x384xf32>
    tpu.vector_store %arg5[%c0_42, %c0_43, %c0_44], %32 {strides = array<i32>} : memref<1x16x384xf32, #tpu.memory_space<vmem>>, vector<1x16x384xf32>,
    return
  }
  func.func @transform_0(%arg0: i32, %arg1: i32, %arg2: i32) -> (i32, i32, i32, i32) {
    %c0_i32 = arith.constant 0 : i32
    %c0_i32_0 = arith.constant 0 : i32
    %c0_i32_1 = arith.constant 0 : i32
    return %arg0, %arg1, %c0_i32, %c0_i32_0 : i32, i32, i32, i32
  }
  func.func @transform_1(%arg0: i32, %arg1: i32, %arg2: i32) -> (i32, i32) {
    %c0_i32 = arith.constant 0 : i32
    %c0_i32_0 = arith.constant 0 : i32
    return %arg2, %c0_i32 : i32, i32
  }
  func.func @transform_2(%arg0: i32, %arg1: i32, %arg2: i32) -> (i32, i32, i32) {
    %c0_i32 = arith.constant 0 : i32
    return %arg0, %arg2, %arg1 : i32, i32, i32
  }
}

</mosaic_0001>

<llo_original>
// kernel: a_call__.1
$region0: #{a_call__.1}
  #allocation0 [shape = 'u32[]', space=smem, size = 0x4, offset = 0x4, fixed_abs, tag = 'smem constant byte address 0x4 - core index']
  #allocation1 [shape = 'u32[144,128]{1,0:T(1,128)}', space=vmem, size = 0x12000, scoped, tag = 'internal scratch']
  #allocation2 [shape = 'bf16[36,384]{1,0:T(8,128)(2,1)}', space=vmem, size = 0x7800, scoped, tag = 'scratch operand']
  %s0 = inlined_call_operand.vmem [shape: bf16[2,1,4,456], index: 0, kind: input, shape index: {}]
  %s1 = inlined_call_operand.vmem [shape: bf16[16,36], index: 1, kind: input, shape index: {}]
  %s2 = inlined_call_operand.vmem [shape: f32[2,16,384], index: 2, kind: output, shape index: {}]
  %s3 = sld [smem:[#allocation0]]
  $region41: #{a_call__.1} parent=0
    _
  %s5 = ssub.s32 1, %s3
  %s6 = scalar_select 0, %s5, %s3
  loop: start=0, step=1, limit=4
  $region2: #{a_call__.1} parent=0 // loop_pre_header
    _
  $region3: #{a_call__.1} parent=0 // loop_header
    %s8 = sphi 0, %s12
    %p9 = scmp.ge.s32.totalorder %s8, 4
    %s15 = sphi 0, %s34
    %s16 = sphi 0, %s30
    %s17 = sphi 0, %s26
    %s18 = sphi 0, %s15
    %s19 = sphi 0, %s16
    %s20 = sphi 0, %s17
    %s21 = sphi 0, %s18
    %s22 = sphi 0, %s19
    %s23 = sphi 0, %s20
    %s39 = sphi 0, %s41
    %s42 = sphi 0, %s39
    %s43 = sphi 0, %s42
    %s59 = sphi 0, %s43
    %s65 = sphi 0, %s67
    %s68 = sphi 0, %s65
    %s69 = sphi 0, %s68
    %s85 = sphi 0, %s69
    %s95 = sphi 0, %s97
    %s98 = sphi 0, %s95
    %s99 = sphi 0, %s98
    %s115 = sphi 0, %s99
  $region4: #{a_call__.1} parent=0 // loop_header_branch
    %11 = sbr.rel (%p9) target = $region8
  $region5: #{a_call__.1} parent=0 // loop_body
    %s13 = ssub.s32 %s8, 1
    %s14 = ssub.s32 %s8, 2
    %s24 = sadd.s32 1, %s17
    %p25 = scmp.ge.s32.totalorder %s24, 1
    %s26 = scalar_select %p25, 0, %s24
    %s27 = sadd.s32 1, %s16
    %s28 = scalar_select %p25, %s27, %s16
    %p29 = scmp.ge.s32.totalorder %s28, 1
    %s30 = scalar_select %p29, 0, %s28
    %s31 = sadd.s32 1, %s15
    %s32 = scalar_select %p29, %s31, %s15
    %p33 = scmp.ge.s32.totalorder %s32, 2
    %s34 = scalar_select %p33, 0, %s32
    %s35 = ssub.s32 %s15, %s34
    %s36 = ssub.s32 %s16, %s30
    %s37 = sor.u32 %s35, %s36
    %p38 = scmp.eq.s32.totalorder %s37, 0
    %s40 = sadd.s32 %s39, 1
    %s41 = scalar_select %p38, %s39, %s40
    %p44 = pneg %p38
    %p45 = scmp.eq.s32.totalorder %s8, 1
    %p46 = por %p44, %p45
    %p47 = scmp.ne.s32.totalorder %s39, %s42
    %p48 = scmp.eq.s32.totalorder %s8, 0
    %p49 = por %p47, %p48
    %p50 = scmp.ne.s32.totalorder %s39, %s42
    %p51 = scmp.eq.s32.totalorder %s13, 1
    %p52 = por %p50, %p51
    %p53 = scmp.ne.s32.totalorder %s42, %s43
    %p54 = scmp.eq.s32.totalorder %s13, 0
    %p55 = por %p53, %p54
    %p56 = scmp.ne.s32.totalorder %s42, %s43
    %p57 = scmp.eq.s32.totalorder %s14, 1
    %p58 = por %p56, %p57
    %p60 = scmp.ne.s32.totalorder %s43, %s59
    %p61 = scmp.eq.s32.totalorder %s14, 0
    %p62 = por %p60, %p61
    %s63 = ssub.s32 %s17, %s26
    %p64 = scmp.eq.s32.totalorder %s63, 0
    %s66 = sadd.s32 %s65, 1
    %s67 = scalar_select %p64, %s65, %s66
    %p70 = pneg %p64
    %p71 = scmp.eq.s32.totalorder %s8, 1
    %p72 = por %p70, %p71
    %p73 = scmp.ne.s32.totalorder %s65, %s68
    %p74 = scmp.eq.s32.totalorder %s8, 0
    %p75 = por %p73, %p74
    %p76 = scmp.ne.s32.totalorder %s65, %s68
    %p77 = scmp.eq.s32.totalorder %s13, 1
    %p78 = por %p76, %p77
    %p79 = scmp.ne.s32.totalorder %s68, %s69
    %p80 = scmp.eq.s32.totalorder %s13, 0
    %p81 = por %p79, %p80
    %p82 = scmp.ne.s32.totalorder %s68, %s69
    %p83 = scmp.eq.s32.totalorder %s14, 1
    %p84 = por %p82, %p83
    %p86 = scmp.ne.s32.totalorder %s69, %s85
    %p87 = scmp.eq.s32.totalorder %s14, 0
    %p88 = por %p86, %p87
    %s89 = ssub.s32 %s15, %s34
    %s90 = ssub.s32 %s17, %s26
    %s91 = sor.u32 %s89, %s90
    %s92 = ssub.s32 %s16, %s30
    %s93 = sor.u32 %s91, %s92
    %p94 = scmp.eq.s32.totalorder %s93, 0
    %s96 = sadd.s32 %s95, 1
    %s97 = scalar_select %p94, %s95, %s96
    %p100 = pneg %p94
    %p101 = scmp.eq.s32.totalorder %s8, 1
    %p102 = por %p100, %p101
    %p103 = scmp.ne.s32.totalorder %s95, %s98
    %p104 = scmp.eq.s32.totalorder %s8, 0
    %p105 = por %p103, %p104
    %p106 = scmp.ne.s32.totalorder %s95, %s98
    %p107 = scmp.eq.s32.totalorder %s13, 1
    %p108 = por %p106, %p107
    %p109 = scmp.ne.s32.totalorder %s98, %s99
    %p110 = scmp.eq.s32.totalorder %s13, 0
    %p111 = por %p109, %p110
    %p112 = scmp.ne.s32.totalorder %s98, %s99
    %p113 = scmp.eq.s32.totalorder %s14, 1
    %p114 = por %p112, %p113
    %p116 = scmp.ne.s32.totalorder %s99, %s115
    %p117 = scmp.eq.s32.totalorder %s14, 0
    %p118 = por %p116, %p117
    %p119 = scmp.le.s32.totalorder 1, %s8
    %p120 = scmp.lt.s32.totalorder %s8, 3
    %p121 = pnand %p119, %p120
    %p122 = pneg %p121
    // Predicated region
    $region9: #{a_call__.1} parent=5 // pred_check
      _
    $region10: #{a_call__.1} parent=5 // pred_check_branch
      %124 = sbr.rel (%p121) target = $region12
    $region11: #{a_call__.1} parent=5 // pred_region
      %s125 = ssub.s32 %s8, 1
      // Predicated region
      $region13: #{a_call__.1} parent=11 // pred_check
        %p126 = pneg %p81
      $region14: #{a_call__.1} parent=11 // pred_check_branch
        %128 = sbr.rel (%p126) target = $region16
      $region15: #{a_call__.1} parent=11 // pred_region
        %s129 = smul.u32 2, %s20
        %p130 = scmp.lt.s32.totalorder %s129, 1
        %s131 = scalar_select %p130, %s129, 1
        %s132 = smul.addr %s131, 4
        %s133 = scalar_lea.vmem %s1, %s132
        %s134 = smul.u32 2, %s20
      $region16: #{a_call__.1} parent=11 // pred_fallthru
        _
    $region12: #{a_call__.1} parent=5 // pred_fallthru
      _
    %p135 = scmp.lt.s32.totalorder %s8, 2
    // Predicated region
    $region17: #{a_call__.1} parent=5 // pred_check
      %p136 = pneg %p135
    $region18: #{a_call__.1} parent=5 // pred_check_branch
      %138 = sbr.rel (%p136) target = $region20
    $region19: #{a_call__.1} parent=5 // pred_region
      // Predicated region
      $region21: #{a_call__.1} parent=19 // pred_check
        %p139 = pneg %p49
      $region22: #{a_call__.1} parent=19 // pred_check_branch
        %141 = sbr.rel (%p139) target = $region24
      $region23: #{a_call__.1} parent=19 // pred_region
        %p142 = scmp.lt.s32.totalorder %s15, 1
        %s143 = scalar_select %p142, %s15, 1
        %p144 = scmp.lt.s32.totalorder %s16, 0
        %s145 = scalar_select %p144, %s16, 0
        %s146 = smul.addr %s145, 4
        %s147 = smul.addr %s143, 4
        %s148 = sadd.s32 %s146, %s147
        %s149 = smul.addr %s148, 2
        %s150 = scalar_lea.vmem %s0, %s149
      $region24: #{a_call__.1} parent=19 // pred_fallthru
        _
    $region20: #{a_call__.1} parent=5 // pred_fallthru
      _
    %p151 = scmp.le.s32.totalorder 1, %s8
    %p152 = scmp.lt.s32.totalorder %s8, 3
    %p153 = pnand %p151, %p152
    %p154 = pneg %p153
    // Predicated region
    $region25: #{a_call__.1} parent=5 // pred_check
      _
    $region26: #{a_call__.1} parent=5 // pred_check_branch
      %156 = sbr.rel (%p153) target = $region28
    $region27: #{a_call__.1} parent=5 // pred_region
      %s157 = ssub.s32 %s8, 1
      %p158 = scmp.lt.s32.totalorder %s18, 1
      %s159 = scalar_select %p158, %s18, 1
      %p160 = scmp.lt.s32.totalorder %s19, 0
      %s161 = scalar_select %p160, %s19, 0
      %s162 = smul.addr %s161, 4
      %s163 = smul.addr %s159, 4
      %s164 = sadd.s32 %s162, %s163
      %s165 = smul.addr %s164, 2
      %s166 = scalar_lea.vmem %s0, %s165
      %p167 = pneg %p55
      %p168 = pneg %p52
      %s169 = smul.u32 2, %s20
      %p170 = scmp.lt.s32.totalorder %s169, 1
      %s171 = scalar_select %p170, %s169, 1
      %s172 = smul.addr %s171, 4
      %s173 = scalar_lea.vmem %s1, %s172
      %p174 = pneg %p81
      %p175 = pneg %p78
      %p176 = pneg %p111
      %p177 = pneg %p108
      %s178 = smul.u32 2, %s20
      %s179 = smul.u32 3, %s19
      %p180 = scmp.lt.s32.totalorder %s18, 1
      %s181 = scalar_select %p180, %s18, 1
      %p182 = scmp.lt.s32.totalorder %s178, 1
      %s183 = scalar_select %p182, %s178, 1
      %p184 = scmp.lt.s32.totalorder %s179, 2
      %s185 = scalar_select %p184, %s179, 2
      %s186 = smul.addr %s183, 3
      %s187 = sadd.s32 %s185, %s186
      %s188 = smul.addr %s181, 6
      %s189 = sadd.s32 %s187, %s188
      %s190 = smul.addr %s189, 8
      %s191 = scalar_lea.vmem %s2, %s190
      %p192 = scmp.lt.s32.totalorder %s18, 1
      %s193 = scalar_select %p192, %s18, 1
      %p194 = scmp.lt.s32.totalorder %s19, 0
      %s195 = scalar_select %p194, %s19, 0
      %s196 = smul.addr %s195, 4
      %s197 = smul.addr %s193, 4
      %s198 = sadd.s32 %s196, %s197
      %s199 = smul.addr %s198, 2
      %s200 = scalar_lea.vmem %s0, %s199
      %s201 = smul.u32 2, %s20
      %p202 = scmp.lt.s32.totalorder %s201, 1
      %s203 = scalar_select %p202, %s201, 1
      %s204 = smul.addr %s203, 4
      %s205 = scalar_lea.vmem %s1, %s204
      %s206 = smul.u32 2, %s20
      %s207 = smul.u32 2, %s20
      %s208 = smul.u32 3, %s19
      %p209 = scmp.lt.s32.totalorder %s18, 1
      %s210 = scalar_select %p209, %s18, 1
      %p211 = scmp.lt.s32.totalorder %s207, 1
      %s212 = scalar_select %p211, %s207, 1
      %p213 = scmp.lt.s32.totalorder %s208, 2
      %s214 = scalar_select %p213, %s208, 2
      %s215 = smul.addr %s212, 3
      %s216 = sadd.s32 %s214, %s215
      %s217 = smul.addr %s210, 6
      %s218 = sadd.s32 %s216, %s217
      %s219 = smul.addr %s218, 8
      %s220 = scalar_lea.vmem %s2, %s219
      %s221 = smul.u32 2, %s20
      %s222 = smul.u32 3, %s19
      %v224 = vld [vmem:[%s200] sm:$0x3f]
      %v226 = vcombine.high %v224, %v224
      %v228 = vunpack.c.l.s4 1983009808
      %v229 = vunpack.c.0.s8 %v228
      %v230 = vlaneseq
      %v231 = vshrl.u32 %v230, 7
      %v232 = vsub.s32 %v229, %v231
      %v233 = vrot.slane %v224, %v232
      %v235 = vunpack.c.l.s4 1983009808
      %v236 = vunpack.c.0.s8 %v235
      %v237 = vlaneseq
      %v238 = vshrl.u32 %v237, 7
      %v239 = vsub.s32 %v236, %v238
      %v240 = vrot.slane %v226, %v239
      %243 = vst [vmem:[#allocation2] sm:$0x33] %v233
      %244 = vst [vmem:[#allocation2 + $0x8] sm:$0x3] %v240
      %v245 = vld [vmem:[%s200] sm:$0xff]
      %v247 = vcombine.low %v245, %v245
      %v249 = vunpack.c.l.s4 1983009808
      %v250 = vunpack.c.0.s8 %v249
      %v251 = vlaneseq
      %v252 = vshrl.u32 %v251, 7
      %v253 = vsub.s32 %v250, %v252
      %v254 = vrot.slane %v247, %v253
      %v256 = vunpack.c.l.s4 1983009808
      %v257 = vunpack.c.0.s8 %v256
      %v258 = vlaneseq
      %v259 = vshrl.u32 %v258, 7
      %v260 = vsub.s32 %v257, %v259
      %v261 = vrot.slane %v245, %v260
      %262 = vrot.lane.b32.xlu0 %v254, 127
      %v263 = vpop.permute.xlu0 %262
      %264 = vrot.lane.b32.xlu0 %v261, 127
      %v265 = vpop.permute.xlu0 %264
      %v266 = vrot.slane %v263, 4
      %v267 = vrot.slane %v265, 4
      %vm268 = vcmask 1043456
      %v269 = vsel %vm268, %v266, %v267
      %vm270 = vcmask 1039360
      %v271 = vsel %vm270, %v263, %v269
      %v272 = vsel %vm270, %v265, %v267
      %275 = vst [vmem:[#allocation2] sm:$0xcc] %v271
      %276 = vst [vmem:[#allocation2 + $0x8] sm:$0xc] %v272
      %v277 = vld [vmem:[%s200] sm:$0xff]
      %v279 = vcombine.high %v277, %v277
      %v281 = vunpack.c.l.s4 1983009808
      %v282 = vunpack.c.0.s8 %v281
      %v283 = vlaneseq
      %v284 = vshrl.u32 %v283, 7
      %v285 = vsub.s32 %v282, %v284
      %v286 = vrot.slane %v277, %v285
      %v288 = vunpack.c.l.s4 1983009808
      %v289 = vunpack.c.0.s8 %v288
      %v290 = vlaneseq
      %v291 = vshrl.u32 %v290, 7
      %v292 = vsub.s32 %v289, %v291
      %v293 = vrot.slane %v279, %v292
      %294 = vrot.lane.b32.xlu0 %v286, 126
      %v295 = vpop.permute.xlu0 %294
      %296 = vrot.lane.b32.xlu0 %v293, 126
      %v297 = vpop.permute.xlu0 %296
      %v298 = vrot.slane %v295, 4
      %v299 = vrot.slane %v297, 4
      %v300 = vsel %vm268, %v298, %v299
      %vm301 = vcmask 1031168
      %v302 = vsel %vm301, %v295, %v300
      %v303 = vsel %vm301, %v297, %v299
      %306 = vst [vmem:[#allocation2 + $0xc] sm:$0x33] %v302
      %307 = vst [vmem:[#allocation2 + $0x14] sm:$0x3] %v303
      %v308 = vld [vmem:[%s200] sm:$0xff]
      %v310 = vcombine.low %v308, %v308
      %v312 = vunpack.c.l.s4 1983009808
      %v313 = vunpack.c.0.s8 %v312
      %v314 = vlaneseq
      %v315 = vshrl.u32 %v314, 7
      %v316 = vsub.s32 %v313, %v315
      %v317 = vrot.slane %v310, %v316
      %v319 = vunpack.c.l.s4 1983009808
      %v320 = vunpack.c.0.s8 %v319
      %v321 = vlaneseq
      %v322 = vshrl.u32 %v321, 7
      %v323 = vsub.s32 %v320, %v322
      %v324 = vrot.slane %v308, %v323
      %325 = vrot.lane.b32.xlu0 %v317, 104
      %v326 = vpop.permute.xlu0 %325
      %327 = vrot.lane.b32.xlu0 %v324, 104
      %v328 = vpop.permute.xlu0 %327
      %v329 = vrot.slane %v326, 4
      %v330 = vrot.slane %v328, 4
      %v331 = vsel %vm268, %v329, %v330
      %vm332 = vcmask 850944
      %v333 = vsel %vm332, %v326, %v331
      %v334 = vsel %vm332, %v328, %v330
      %337 = vst [vmem:[#allocation2 + $0xc] sm:$0xcc] %v333
      %338 = vst [vmem:[#allocation2 + $0x14] sm:$0xc] %v334
      %v339 = vld [vmem:[%s200] sm:$0xff]
      %v341 = vcombine.high %v339, %v339
      %v343 = vunpack.c.l.s4 1983009808
      %v344 = vunpack.c.0.s8 %v343
      %v345 = vlaneseq
      %v346 = vshrl.u32 %v345, 7
      %v347 = vsub.s32 %v344, %v346
      %v348 = vrot.slane %v339, %v347
      %v350 = vunpack.c.l.s4 1983009808
      %v351 = vunpack.c.0.s8 %v350
      %v352 = vlaneseq
      %v353 = vshrl.u32 %v352, 7
      %v354 = vsub.s32 %v351, %v353
      %v355 = vrot.slane %v341, %v354
      %356 = vrot.lane.b32.xlu0 %v348, 103
      %v357 = vpop.permute.xlu0 %356
      %358 = vrot.lane.b32.xlu0 %v355, 103
      %v359 = vpop.permute.xlu0 %358
      %v360 = vrot.slane %v357, 4
      %v361 = vrot.slane %v359, 4
      %v362 = vsel %vm268, %v360, %v361
      %vm363 = vcmask 842752
      %v364 = vsel %vm363, %v357, %v362
      %v365 = vsel %vm363, %v359, %v361
      %368 = vst [vmem:[#allocation2 + $0x18] sm:$0x33] %v364
      %369 = vst [vmem:[#allocation2 + $0x20] sm:$0x3] %v365
      %v370 = vld [vmem:[%s200] sm:$0xff]
      %v372 = vcombine.low %v370, %v370
      %v374 = vunpack.c.l.s4 1983009808
      %v375 = vunpack.c.0.s8 %v374
      %v376 = vlaneseq
      %v377 = vshrl.u32 %v376, 7
      %v378 = vsub.s32 %v375, %v377
      %v379 = vrot.slane %v372, %v378
      %v381 = vunpack.c.l.s4 1983009808
      %v382 = vunpack.c.0.s8 %v381
      %v383 = vlaneseq
      %v384 = vshrl.u32 %v383, 7
      %v385 = vsub.s32 %v382, %v384
      %v386 = vrot.slane %v370, %v385
      %387 = vrot.lane.b32.xlu0 %v379, 102
      %v388 = vpop.permute.xlu0 %387
      %389 = vrot.lane.b32.xlu0 %v386, 102
      %v390 = vpop.permute.xlu0 %389
      %v391 = vrot.slane %v388, 4
      %v392 = vrot.slane %v390, 4
      %v393 = vsel %vm268, %v391, %v392
      %vm394 = vcmask 834560
      %v395 = vsel %vm394, %v388, %v393
      %v396 = vsel %vm394, %v390, %v392
      %399 = vst [vmem:[#allocation2 + $0x18] sm:$0xcc] %v395
      %400 = vst [vmem:[#allocation2 + $0x20] sm:$0xc] %v396
      %v401 = vld [vmem:[%s200] sm:$0xff]
      %v403 = vcombine.high %v401, %v401
      %v405 = vunpack.c.l.s4 1983009808
      %v406 = vunpack.c.0.s8 %v405
      %v407 = vlaneseq
      %v408 = vshrl.u32 %v407, 7
      %v409 = vsub.s32 %v406, %v408
      %v410 = vrot.slane %v401, %v409
      %v412 = vunpack.c.l.s4 1983009808
      %v413 = vunpack.c.0.s8 %v412
      %v414 = vlaneseq
      %v415 = vshrl.u32 %v414, 7
      %v416 = vsub.s32 %v413, %v415
      %v417 = vrot.slane %v403, %v416
      %418 = vrot.lane.b32.xlu0 %v410, 80
      %v419 = vpop.permute.xlu0 %418
      %420 = vrot.lane.b32.xlu0 %v417, 80
      %v421 = vpop.permute.xlu0 %420
      %v422 = vrot.slane %v419, 4
      %v423 = vrot.slane %v421, 4
      %v424 = vsel %vm268, %v422, %v423
      %vm425 = vcmask 654336
      %v426 = vsel %vm425, %v419, %v424
      %v427 = vsel %vm425, %v421, %v423
      %430 = vst [vmem:[#allocation2 + $0x24] sm:$0x33] %v426
      %431 = vst [vmem:[#allocation2 + $0x2c] sm:$0x3] %v427
      %v432 = vld [vmem:[%s200] sm:$0xff]
      %v434 = vcombine.low %v432, %v432
      %v436 = vunpack.c.l.s4 1983009808
      %v437 = vunpack.c.0.s8 %v436
      %v438 = vlaneseq
      %v439 = vshrl.u32 %v438, 7
      %v440 = vsub.s32 %v437, %v439
      %v441 = vrot.slane %v434, %v440
      %v443 = vunpack.c.l.s4 1983009808
      %v444 = vunpack.c.0.s8 %v443
      %v445 = vlaneseq
      %v446 = vshrl.u32 %v445, 7
      %v447 = vsub.s32 %v444, %v446
      %v448 = vrot.slane %v432, %v447
      %449 = vrot.lane.b32.xlu0 %v441, 79
      %v450 = vpop.permute.xlu0 %449
      %451 = vrot.lane.b32.xlu0 %v448, 79
      %v452 = vpop.permute.xlu0 %451
      %v453 = vrot.slane %v450, 4
      %v454 = vrot.slane %v452, 4
      %v455 = vsel %vm268, %v453, %v454
      %vm456 = vcmask 646144
      %v457 = vsel %vm456, %v450, %v455
      %v458 = vsel %vm456, %v452, %v454
      %461 = vst [vmem:[#allocation2 + $0x24] sm:$0xcc] %v457
      %462 = vst [vmem:[#allocation2 + $0x2c] sm:$0xc] %v458
      %v463 = vld [vmem:[%s200] sm:$0xff]
      %v465 = vcombine.high %v463, %v463
      %v467 = vunpack.c.l.s4 1983009808
      %v468 = vunpack.c.0.s8 %v467
      %v469 = vlaneseq
      %v470 = vshrl.u32 %v469, 7
      %v471 = vsub.s32 %v468, %v470
      %v472 = vrot.slane %v463, %v471
      %v474 = vunpack.c.l.s4 1983009808
      %v475 = vunpack.c.0.s8 %v474
      %v476 = vlaneseq
      %v477 = vshrl.u32 %v476, 7
      %v478 = vsub.s32 %v475, %v477
      %v479 = vrot.slane %v465, %v478
      %480 = vrot.lane.b32.xlu0 %v472, 78
      %v481 = vpop.permute.xlu0 %480
      %482 = vrot.lane.b32.xlu0 %v479, 78
      %v483 = vpop.permute.xlu0 %482
      %v484 = vrot.slane %v481, 4
      %v485 = vrot.slane %v483, 4
      %v486 = vsel %vm268, %v484, %v485
      %vm487 = vcmask 637952
      %v488 = vsel %vm487, %v481, %v486
      %v489 = vsel %vm487, %v483, %v485
      %492 = vst [vmem:[#allocation2 + $0x30] sm:$0x33] %v488
      %493 = vst [vmem:[#allocation2 + $0x38] sm:$0x3] %v489
      %v494 = vld [vmem:[%s205] sm:$0xf]
      %v495 = vld [vmem:[%s205 + $0x4] sm:$0xf]
      %v496 = vld [vmem:[#allocation2] sm:$0xff]
      %v497 = vld [vmem:[#allocation2 + $0x8] sm:$0xf]
      %v498 = vld [vmem:[#allocation2 + $0xc] sm:$0xff]
      %v499 = vld [vmem:[#allocation2 + $0x14] sm:$0xf]
      %v500 = vld [vmem:[#allocation2 + $0x18] sm:$0xff]
      %v501 = vld [vmem:[#allocation2 + $0x20] sm:$0xf]
      %v502 = vld [vmem:[#allocation2 + $0x24] sm:$0xff]
      %v503 = vld [vmem:[#allocation2 + $0x2c] sm:$0xf]
      %v504 = vld [vmem:[#allocation2 + $0x30] sm:$0x33]
      %v505 = vld [vmem:[#allocation2 + $0x38] sm:$0x3]
      %v508 = vunpack.c.l.b16 %v494
      %v509 = vunpack.c.l.b16 %v495
      %v510 = vpack.c.b16 %v509, %v508
      %v521 = vunpack.c.l.b16 %v496
      %v522 = vunpack.c.h.b16 %v496
      %v523 = vunpack.c.l.b16 %v497
      %v524 = vunpack.c.l.b16 %v498
      %v525 = vunpack.c.h.b16 %v498
      %v526 = vunpack.c.l.b16 %v499
      %v527 = vunpack.c.l.b16 %v500
      %v528 = vunpack.c.h.b16 %v500
      %v529 = vunpack.c.l.b16 %v501
      %v530 = vunpack.c.l.b16 %v502
      %v531 = vunpack.c.h.b16 %v502
      %v532 = vunpack.c.l.b16 %v503
      %v533 = vunpack.c.l.b16 %v504
      %v534 = vunpack.c.h.b16 %v504
      %v535 = vunpack.c.l.b16 %v505
      %v536 = vpack.c.b16 %v524, %v521
      %v537 = vpack.c.b16 %v525, %v522
      %v538 = vpack.c.b16 %v526, %v523
      %v539 = vpack.c.b16 %v530, %v527
      %v540 = vpack.c.b16 %v531, %v528
      %v541 = vpack.c.b16 %v532, %v529
      %v542 = vpack.c.b16 %v533, %v533
      %v543 = vpack.c.b16 %v534, %v534
      %v544 = vpack.c.b16 %v535, %v535
      %vm551 = vcmask 293888
      %v553 = vsel %vm551, %v510, 0
      %vm555 = vcmask 1041408
      %v557 = vsel %vm555, %v542, 0
      %v560 = vsel %vm555, %v543, 0
      %v563 = vsel %vm555, %v544, 0
      %565 = vmatprep.subr.bf16.mxu0 0
      %566 = vmatpush1.bf16.msra.mxu0 0
      %567 = vmatprep.subr.bf16.mxu0 0
      %568 = vmatpush1.bf16.msra.mxu0 0
      %569 = vmatprep.subr.bf16.mxu0 0
      %570 = vmatpush1.bf16.msra.mxu0 0
      %571 = vmatprep.subr.bf16.mxu0 0
      %572 = vmatpush1.bf16.msra.mxu0 0
      %573 = vmatprep.subr.bf16.mxu0 0
      %574 = vmatpush1.bf16.msra.mxu0 0
      %575 = vmatprep.subr.bf16.mxu0 %v560
      %576 = vmatpush1.bf16.msra.mxu0 %v557
      %577 = vmatprep.subr.bf16.mxu0 %v540
      %578 = vmatpush1.bf16.msra.mxu0 %v539
      %579 = vmatprep.subr.bf16.mxu0 %v537
      %580 = vmatpush1.bf16.msra.mxu0 %v536
      %581 = vmatprep.subr.bf16.mxu0 0
      %582 = vmatpush2.bf16.msra.mxu0 0
      %583 = vmatprep.subr.bf16.mxu0 0
      %584 = vmatpush2.bf16.msra.mxu0 0
      %585 = vmatprep.subr.bf16.mxu0 0
      %586 = vmatpush2.bf16.msra.mxu0 0
      %587 = vmatprep.subr.bf16.mxu0 0
      %588 = vmatpush2.bf16.msra.mxu0 0
      %589 = vmatprep.subr.bf16.mxu0 0
      %590 = vmatpush2.bf16.msra.mxu0 0
      %591 = vmatprep.subr.bf16.mxu0 0
      %592 = vmatpush2.bf16.msra.mxu0 0
      %593 = vmatprep.subr.bf16.mxu0 0
      %594 = vmatpush2.bf16.msra.mxu0 0
      %595 = vmatprep.subr.bf16.mxu0 0
      %596 = vmatpush2.bf16.msra.mxu0 0
      %597 = vmatprep.mubr.bf16.mxu0 0
      %598 = vmatmul.mubr.bf16.gmra.mxu0 %v553
      %v599 = vpop.f32.mrf.mxu0
      %v600 = vadd.f32 0.0, %v599
      %v601 = vpop.f32.mrf.mxu0
      %v602 = vadd.f32 0.0, %v601
      %v603 = vpop.f32.mrf.mxu0
      %v604 = vadd.f32 0.0, %v603
      %v605 = vpop.f32.mrf.mxu0
      %v606 = vadd.f32 0.0, %v605
      %607 = vdwg.mxu0
      %608 = vmatprep.subr.bf16.mxu0 0
      %609 = vmatpush1.bf16.msra.mxu0 0
      %610 = vmatprep.subr.bf16.mxu0 0
      %611 = vmatpush1.bf16.msra.mxu0 0
      %612 = vmatprep.subr.bf16.mxu0 0
      %613 = vmatpush1.bf16.msra.mxu0 0
      %614 = vmatprep.subr.bf16.mxu0 0
      %615 = vmatpush1.bf16.msra.mxu0 0
      %616 = vmatprep.subr.bf16.mxu0 0
      %617 = vmatpush1.bf16.msra.mxu0 0
      %618 = vmatprep.subr.bf16.mxu0 0
      %619 = vmatpush1.bf16.msra.mxu0 %v563
      %620 = vmatprep.subr.bf16.mxu0 0
      %621 = vmatpush1.bf16.msra.mxu0 %v541
      %622 = vmatprep.subr.bf16.mxu0 0
      %623 = vmatpush1.bf16.msra.mxu0 %v538
      %624 = vmatprep.subr.bf16.mxu0 0
      %625 = vmatpush2.bf16.msra.mxu0 0
      %626 = vmatprep.subr.bf16.mxu0 0
      %627 = vmatpush2.bf16.msra.mxu0 0
      %628 = vmatprep.subr.bf16.mxu0 0
      %629 = vmatpush2.bf16.msra.mxu0 0
      %630 = vmatprep.subr.bf16.mxu0 0
      %631 = vmatpush2.bf16.msra.mxu0 0
      %632 = vmatprep.subr.bf16.mxu0 0
      %633 = vmatpush2.bf16.msra.mxu0 0
      %634 = vmatprep.subr.bf16.mxu0 0
      %635 = vmatpush2.bf16.msra.mxu0 0
      %636 = vmatprep.subr.bf16.mxu0 0
      %637 = vmatpush2.bf16.msra.mxu0 0
      %638 = vmatprep.subr.bf16.mxu0 0
      %639 = vmatpush2.bf16.msra.mxu0 0
      %640 = vmatprep.mubr.bf16.mxu0 0
      %641 = vmatmul.mubr.bf16.gmra.mxu0 %v553
      %v642 = vpop.f32.mrf.mxu0
      %v643 = vadd.f32 0.0, %v642
      %v644 = vpop.f32.mrf.mxu0
      %v645 = vpop.f32.mrf.mxu0
      %v646 = vadd.f32 0.0, %v645
      %v647 = vpop.f32.mrf.mxu0
      %648 = vdwg.mxu0
      %649 = vst [vmem:[%s220] sm:$0xff] %v600
      %650 = vst [vmem:[%s220 + $0x8] sm:$0xff] %v602
      %651 = vst [vmem:[%s220 + $0x10] sm:$0xff] %v643
      %652 = vst [vmem:[%s220 + $0x18] sm:$0xff] %v604
      %653 = vst [vmem:[%s220 + $0x20] sm:$0xff] %v606
      %654 = vst [vmem:[%s220 + $0x28] sm:$0xff] %v646
      %s655 = smul.u32 2, %s20
      %s656 = smul.u32 3, %s19
      %p657 = scmp.lt.s32.totalorder %s18, 1
      %s658 = scalar_select %p657, %s18, 1
      %p659 = scmp.lt.s32.totalorder %s655, 1
      %s660 = scalar_select %p659, %s655, 1
      %p661 = scmp.lt.s32.totalorder %s656, 2
      %s662 = scalar_select %p661, %s656, 2
      %s663 = smul.addr %s660, 3
      %s664 = sadd.s32 %s662, %s663
      %s665 = smul.addr %s658, 6
      %s666 = sadd.s32 %s664, %s665
      %s667 = smul.addr %s666, 8
      %s668 = scalar_lea.vmem %s2, %s667
      // Predicated region
      $region29: #{a_call__.1} parent=27 // pred_check
        %p669 = pneg %p108
      $region30: #{a_call__.1} parent=27 // pred_check_branch
        %671 = sbr.rel (%p669) target = $region32
      $region31: #{a_call__.1} parent=27 // pred_region
        %s672 = smul.u32 2, %s20
        %s673 = smul.u32 3, %s19
      $region32: #{a_call__.1} parent=27 // pred_fallthru
        _
    $region28: #{a_call__.1} parent=5 // pred_fallthru
      _
    %p674 = scmp.le.s32.totalorder 2, %s8
    // Predicated region
    $region33: #{a_call__.1} parent=5 // pred_check
      %p675 = pneg %p674
    $region34: #{a_call__.1} parent=5 // pred_check_branch
      %677 = sbr.rel (%p675) target = $region36
    $region35: #{a_call__.1} parent=5 // pred_region
      %s678 = ssub.s32 %s8, 2
      // Predicated region
      $region37: #{a_call__.1} parent=35 // pred_check
        %p679 = pneg %p114
      $region38: #{a_call__.1} parent=35 // pred_check_branch
        %681 = sbr.rel (%p679) target = $region40
      $region39: #{a_call__.1} parent=35 // pred_region
        %s682 = smul.u32 2, %s23
        %s683 = smul.u32 3, %s22
        %p684 = scmp.lt.s32.totalorder %s21, 1
        %s685 = scalar_select %p684, %s21, 1
        %p686 = scmp.lt.s32.totalorder %s682, 1
        %s687 = scalar_select %p686, %s682, 1
        %p688 = scmp.lt.s32.totalorder %s683, 2
        %s689 = scalar_select %p688, %s683, 2
        %s690 = smul.addr %s687, 3
        %s691 = sadd.s32 %s689, %s690
        %s692 = smul.addr %s685, 6
        %s693 = sadd.s32 %s691, %s692
        %s694 = smul.addr %s693, 8
        %s695 = scalar_lea.vmem %s2, %s694
      $region40: #{a_call__.1} parent=35 // pred_fallthru
        _
    $region36: #{a_call__.1} parent=5 // pred_fallthru
      _
  $region6: #{a_call__.1} parent=0 // loop_footer
    %s12 = sadd.s32 1, %s8
  $region7: #{a_call__.1} parent=0 // loop_footer_branch
    %7 = sbr.rel target = $region3
  $region8: #{a_call__.1} parent=0 // loop_exit
    _

</llo_original>
